<compile_context>
chip_gen: v5e
topology: v5e:2x2
jax: 0.10.0
libtpu: 0.0.40
codegen_flags: <defaults>
</compile_context>

<pallas_src>
import jax
import jax.numpy as jnp
from jax.experimental import pallas as pl
from jax.experimental.pallas import tpu as pltpu

IN_FEATS = 4
HIDDEN = 64          # args.hidden_channels in the reference module
NUM_CLASSES = 3
LANE = 128


# ---------------------------------------------------------------------------
# Kernels
# ---------------------------------------------------------------------------
def conv1_kernel(a_ref, xw1_ref, b1_ref, w2_ref, t1_ref, acc_ref):
    """Strip i, K-step k: acc += A_ik @ XW1_k; at last k: t1 = relu(acc+b1) @ W2."""
    k = pl.program_id(1)

    @pl.when(k == 0)
    def _():
        acc_ref[...] = jnp.zeros_like(acc_ref)

    acc_ref[...] += jnp.dot(a_ref[...], xw1_ref[...],
                            preferred_element_type=jnp.float32)

    @pl.when(k == pl.num_programs(1) - 1)
    def _():
        h1 = jnp.maximum(acc_ref[...] + b1_ref[...], 0.0)            # [TM, H]
        t1 = jnp.dot(h1.astype(jnp.bfloat16), w2_ref[...],
                     preferred_element_type=jnp.float32)
        t1_ref[...] = t1.astype(jnp.bfloat16)


def conv2_pool_kernel(a_ref, t1_ref, pt_ref, b2_ref, part_ref, acc_ref, pacc_ref):
    """Strip i, K-step k:
         acc  += A_ik @ t1_k          (conv2 propagation)
         pacc += A_ik @ P^T_k         (pool fold, uses A symmetry)
       at last k:
         h2 = relu(acc + b2); part_i = pacc^T @ h2   -> [b_pad, H] pooled partial.
       h2 never touches HBM."""
    k = pl.program_id(1)

    @pl.when(k == 0)
    def _():
        acc_ref[...] = jnp.zeros_like(acc_ref)
        pacc_ref[...] = jnp.zeros_like(pacc_ref)

    a = a_ref[...]
    acc_ref[...] += jnp.dot(a, t1_ref[...], preferred_element_type=jnp.float32)
    pacc_ref[...] += jnp.dot(a, pt_ref[...], preferred_element_type=jnp.float32)

    @pl.when(k == pl.num_programs(1) - 1)
    def _():
        h2 = jnp.maximum(acc_ref[...] + b2_ref[...], 0.0)            # [TM, H]
        part = jax.lax.dot_general(                                  # [b_pad, H]
            pacc_ref[...], h2,
            dimension_numbers=(((0,), (0,)), ((), ())),
            preferred_element_type=jnp.float32)
        part_ref[0] = part


def pool_lin_kernel(part_ref, w3l_ref, bout_ref, out_ref):
    """Sum pooled partials over strips, then folded conv3-weight + Linear."""
    pooled = jnp.sum(part_ref[...], axis=0)                          # [b_pad, H]
    out_ref[...] = (jnp.dot(pooled, w3l_ref[...],
                            preferred_element_type=jnp.float32) + bout_ref[...])


# ---------------------------------------------------------------------------
# Wrapper helpers
# ---------------------------------------------------------------------------
def _round_up(v, m):
    return ((v + m - 1) // m) * m


def _vmem_capacity_bytes():
    try:
        info = pltpu.get_tpu_info()
        cap = getattr(info, "vmem_capacity_bytes", None)
        if cap:
            return int(cap)
    except Exception:
        pass
    return 64 * 1024 * 1024   # conservative default (v7x per-TC)


def _choose_tiles(n, vmem_cap):
    """Row tile, K (column) tile and padded node count, generation-aware."""
    small_vmem = vmem_cap < 96 * 1024 * 1024          # v7x: 64 MiB per TC
    if n <= 64:
        tm = 8
    elif small_vmem or n <= 4096:
        tm = 128
    else:
        tm = 256
    n_pad = _round_up(n, tm)
    # K-tile the A strip once a double-buffered full-width strip would eat
    # more than ~1/3 of VMEM.
    a_budget = vmem_cap // 3
    if tm < 128 or 2 * tm * n_pad * 2 <= a_budget:
        tk = n_pad
    else:
        cols = (a_budget // (2 * 2 * tm)) // tm * tm   # multiple of tm (>=128)
        tk = max(tm, cols)
        n_pad = _round_up(n, tk)
    return tm, tk, n_pad


def _tile_bytes(shape, itemsize):
    """VMEM footprint of one block, including lane/sublane layout padding."""
    dims = list(shape)
    if len(dims) == 1:
        dims = [1] + dims
    lead = 1
    for d in dims[:-2]:
        lead *= d
    sub = {4: 8, 2: 16, 1: 32}.get(itemsize, 8)
    return lead * _round_up(max(dims[-2], 1), sub) * _round_up(dims[-1], 128) * itemsize


def _compiler_params(semantics, est_bytes, vmem_cap):
    cap = min((vmem_cap * 5) // 8, 64 * 1024 * 1024)   # ~40 MiB on v7x, 64 MiB else
    limit = int(min(cap, max(16 * 1024 * 1024, int(1.3 * est_bytes))))
    return pltpu.CompilerParams(dimension_semantics=semantics,
                                vmem_limit_bytes=limit)


def _a_strip_spec(tm, tk, deep_buffer):
    idx = lambda i, k: (i, k)
    if deep_buffer and hasattr(pl, "Buffered"):
        try:
            return pl.BlockSpec((tm, tk), idx, pipeline_mode=pl.Buffered(3))
        except TypeError:
            pass
    return pl.BlockSpec((tm, tk), idx)


def build_adjacency_bf16(edge_index, num_nodes, n_pad):
    """D^-1/2 (A + I) D^-1/2 scattered directly into a padded bf16 buffer."""
    src = edge_index[0]
    dst = edge_index[1]
    deg = jnp.zeros((num_nodes,), jnp.float32).at[dst].add(1.0) + 1.0   # +self loop
    dinv = jax.lax.rsqrt(deg)                                           # deg >= 1
    vals = (dinv[dst] * dinv[src]).astype(jnp.bfloat16)
    diag = (dinv * dinv).astype(jnp.bfloat16)
    a = jnp.zeros((n_pad, n_pad), jnp.bfloat16)
    a = a.at[dst, src].add(vals)
    idx = jnp.arange(num_nodes)
    a = a.at[idx, idx].add(diag)
    return a


def build_pool_transpose(batch, num_graphs, num_nodes, n_pad, b_pad):
    """P^T (mean-pool matrix transposed), padded bf16 [n_pad, b_pad]."""
    one_hot = (batch[:, None] == jnp.arange(num_graphs)[None, :]).astype(jnp.float32)
    counts = jnp.sum(one_hot, axis=0, keepdims=True)
    pt = one_hot / jnp.maximum(counts, 1.0)
    return (jnp.zeros((n_pad, b_pad), jnp.float32)
            .at[:num_nodes, :num_graphs].set(pt)).astype(jnp.bfloat16)


def init_params(key):
    def glorot(k, shape):
        lim = jnp.sqrt(6.0 / (shape[0] + shape[1]))
        return jax.random.uniform(k, shape, jnp.float32, -lim, lim)

    ks = jax.random.split(key, 8)
    lin_lim = 1.0 / jnp.sqrt(float(HIDDEN))
    return {
        "w1": glorot(ks[0], (IN_FEATS, HIDDEN)),
        "b1": jnp.zeros((1, HIDDEN), jnp.float32),
        "w2": glorot(ks[1], (HIDDEN, HIDDEN)),
        "b2": jnp.zeros((1, HIDDEN), jnp.float32),
        "w3": glorot(ks[2], (HIDDEN, HIDDEN)),
        "b3": jnp.zeros((1, HIDDEN), jnp.float32),
        # torch.nn.Linear(HIDDEN, 3): weight [3, HIDDEN], bias [3]
        "w_lin": jax.random.uniform(ks[3], (NUM_CLASSES, HIDDEN), jnp.float32,
                                    -lin_lim, lin_lim),
        "b_lin": jax.random.uniform(ks[4], (1, NUM_CLASSES), jnp.float32,
                                    -lin_lim, lin_lim),
    }


# ---------------------------------------------------------------------------
# Forward
# ---------------------------------------------------------------------------
def gcn_forward(x, edge_index, batch, num_graphs, params):
    n = x.shape[0]
    vmem_cap = _vmem_capacity_bytes()
    tm, tk, n_pad = _choose_tiles(n, vmem_cap)
    n_strips = n_pad // tm
    n_k = n_pad // tk
    b_pad = _round_up(max(num_graphs, 1), 8)
    F32, BF16 = 4, 2

    # --- wrapper prep: the only O(N^2) traffic is a single bf16 A write ---
    a_bf16 = build_adjacency_bf16(edge_index, n, n_pad)                  # [n_pad, n_pad]
    pt_bf16 = build_pool_transpose(batch, num_graphs, n, n_pad, b_pad)   # [n_pad, b_pad]
    xw1 = (jnp.zeros((n_pad, HIDDEN), jnp.float32)
           .at[:n].set(x.astype(jnp.float32) @ params["w1"])).astype(jnp.bfloat16)

    b1 = params["b1"].astype(jnp.float32)
    w2 = params["w2"].astype(jnp.bfloat16)
    b2 = params["b2"].astype(jnp.float32)
    # Fold conv3 weight + final Linear into one lane-dense [H, 128] matrix.
    w3l = params["w3"] @ params["w_lin"].T                               # [H, 3]
    w3l_pad = jnp.zeros((HIDDEN, LANE), jnp.float32).at[:, :NUM_CLASSES].set(w3l)
    b_out = params["b3"] @ params["w_lin"].T + params["b_lin"]          # [1, 3]
    b_out_pad = jnp.zeros((1, LANE), jnp.float32).at[:, :NUM_CLASSES].set(b_out)

    grid = (n_strips, n_k)
    sem = ("parallel", "arbitrary")
    deep = (vmem_cap >= 100 * 1024 * 1024 and n_strips * n_k >= 4
            and 3 * _tile_bytes((tm, tk), BF16) < vmem_cap // 4)

    # ---- kernel 1: conv1 propagation + conv2 transform ----
    k1_est = (2 * _tile_bytes((tm, tk), BF16) + 2 * _tile_bytes((tk, HIDDEN), BF16)
              + 2 * _tile_bytes((1, HIDDEN), F32) + 2 * _tile_bytes((HIDDEN, HIDDEN), BF16)
              + 2 * _tile_bytes((tm, HIDDEN), BF16) + _tile_bytes((tm, HIDDEN), F32))
    k1_flops = 2 * n_pad * n_pad * HIDDEN + 2 * n_pad * HIDDEN * HIDDEN
    k1_bytes = (n_pad * n_pad * BF16 + n_pad * HIDDEN * BF16
                + HIDDEN * HIDDEN * BF16 + HIDDEN * F32 + n_pad * HIDDEN * BF16)
    t1 = pl.pallas_call(
        conv1_kernel,
        out_shape=jax.ShapeDtypeStruct((n_pad, HIDDEN), jnp.bfloat16),
        grid=grid,
        in_specs=[
            _a_strip_spec(tm, tk, deep),                           # A strip/tile
            pl.BlockSpec((tk, HIDDEN), lambda i, k: (k, 0)),       # XW1
            pl.BlockSpec((1, HIDDEN), lambda i, k: (0, 0)),        # b1
            pl.BlockSpec((HIDDEN, HIDDEN), lambda i, k: (0, 0)),   # W2
        ],
        out_specs=pl.BlockSpec((tm, HIDDEN), lambda i, k: (i, 0)),
        scratch_shapes=[pltpu.VMEM((tm, HIDDEN), jnp.float32)],
        compiler_params=_compiler_params(sem, k1_est, vmem_cap),
        cost_estimate=pl.CostEstimate(flops=k1_flops, transcendentals=0,
                                      bytes_accessed=k1_bytes),
    )(a_bf16, xw1, b1, w2)

    # ---- kernel 2: conv2 propagation + ReLU + folded mean-pool partials ----
    k2_est = (2 * _tile_bytes((tm, tk), BF16) + 2 * _tile_bytes((tk, HIDDEN), BF16)
              + 2 * _tile_bytes((tk, b_pad), BF16) + 2 * _tile_bytes((1, HIDDEN), F32)
              + 2 * _tile_bytes((1, b_pad, HIDDEN), F32)
              + _tile_bytes((tm, HIDDEN), F32) + _tile_bytes((tm, b_pad), F32))
    k2_flops = 2 * n_pad * n_pad * (HIDDEN + b_pad) + 2 * n_pad * b_pad * HIDDEN
    k2_bytes = (n_pad * n_pad * BF16 + n_pad * HIDDEN * BF16 + n_pad * b_pad * BF16
                + HIDDEN * F32 + n_strips * b_pad * HIDDEN * F32)
    part = pl.pallas_call(
        conv2_pool_kernel,
        out_shape=jax.ShapeDtypeStruct((n_strips, b_pad, HIDDEN), jnp.float32),
        grid=grid,
        in_specs=[
            _a_strip_spec(tm, tk, deep),                           # A strip/tile
            pl.BlockSpec((tk, HIDDEN), lambda i, k: (k, 0)),       # t1
            pl.BlockSpec((tk, b_pad), lambda i, k: (k, 0)),        # P^T
            pl.BlockSpec((1, HIDDEN), lambda i, k: (0, 0)),        # b2
        ],
        out_specs=pl.BlockSpec((1, b_pad, HIDDEN), lambda i, k: (i, 0, 0)),
        scratch_shapes=[pltpu.VMEM((tm, HIDDEN), jnp.float32),
                        pltpu.VMEM((tm, b_pad), jnp.float32)],
        compiler_params=_compiler_params(sem, k2_est, vmem_cap),
        cost_estimate=pl.CostEstimate(flops=k2_flops, transcendentals=0,
                                      bytes_accessed=k2_bytes),
    )(a_bf16, t1, pt_bf16, b2)

    # ---- kernel 3: reduce pooled partials + folded conv3-weight + Linear ----
    vmem_full = pl.BlockSpec(memory_space=pltpu.MemorySpace.VMEM)
    k3_est = (_tile_bytes((n_strips, b_pad, HIDDEN), F32)
              + _tile_bytes((HIDDEN, LANE), F32) + _tile_bytes((1, LANE), F32)
              + _tile_bytes((b_pad, LANE), F32))
    k3_flops = n_strips * b_pad * HIDDEN + 2 * b_pad * HIDDEN * LANE
    out_pad = pl.pallas_call(
        pool_lin_kernel,
        out_shape=jax.ShapeDtypeStruct((b_pad, LANE), jnp.float32),
        in_specs=[vmem_full] * 3,
        out_specs=vmem_full,
        compiler_params=_compiler_params(None, k3_est, vmem_cap),
        cost_estimate=pl.CostEstimate(flops=k3_flops, transcendentals=0,
                                      bytes_accessed=k3_est),
    )(part, w3l_pad, b_out_pad)

    # F.dropout(p=0.3, training=False) -> identity at inference time.
    return out_pad[:num_graphs, :NUM_CLASSES]


if __name__ == "__main__":
    key = jax.random.PRNGKey(0)
    k_feat, k_param = jax.random.split(key)

    # Two graphs of 8 nodes each (16 nodes total), each graph a bidirectional ring.
    num_nodes = 16
    num_graphs = 2
    edges_src, edges_dst = [], []
    for g in range(num_graphs):
        base = g * 8
        for i in range(8):
            u = base + i
            v = base + (i + 1) % 8
            edges_src += [u, v]
            edges_dst += [v, u]
    edge_index = jnp.array([edges_src, edges_dst], dtype=jnp.int32)   # [2, 32]
    batch = jnp.array([0] * 8 + [1] * 8, dtype=jnp.int32)             # [16]

    x = jax.random.normal(k_feat, (num_nodes, IN_FEATS), jnp.float32)  # [16, 4]
    params = init_params(k_param)

    out = gcn_forward(x, edge_index, batch, num_graphs, params)
    out = jax.block_until_ready(out)
    assert out.shape == (num_graphs, NUM_CLASSES)
    assert out.dtype == jnp.float32
    assert bool(jnp.all(jnp.isfinite(out)))
    print("KERNEL_OK")
</pallas_src>

<mosaic_0001>
module attributes {stable_mosaic.version = 11 : i64} {
  func.func @conv1_kernel(%arg0: i32, %arg1: i32, %arg2: memref<8x16xbf16, #tpu.memory_space<vmem>>, %arg3: memref<16x64xbf16, #tpu.memory_space<vmem>>, %arg4: memref<1x64xf32, #tpu.memory_space<vmem>>, %arg5: memref<64x64xbf16, #tpu.memory_space<vmem>>, %arg6: memref<8x64xbf16, #tpu.memory_space<vmem>>, %arg7: memref<8x64xf32, #tpu.memory_space<vmem>>) attributes {dimension_semantics = [#tpu.dimension_semantics<parallel>, #tpu.dimension_semantics<arbitrary>], iteration_bounds = array<i64: 2, 1>, scalar_prefetch = 0 : i64, scratch_operands = 1 : i64, tpu.core_type = #tpu.core_type<tc>, window_params = [{transform_indices = @transform_0, window_bounds = array<i64: 8, 16>}, {transform_indices = @transform_1, window_bounds = array<i64: 16, 64>}, {pipeline_mode = #tpu.pipeline_mode<synchronous>, transform_indices = @transform_2, window_bounds = array<i64: 1, 64>}, {pipeline_mode = #tpu.pipeline_mode<synchronous>, transform_indices = @transform_3, window_bounds = array<i64: 64, 64>}, {transform_indices = @transform_4, window_bounds = array<i64: 8, 64>}]} {
    %c0_i32 = arith.constant 0 : i32
    %0 = arith.cmpi eq, %arg1, %c0_i32 : i32
    %1 = arith.extui %0 : i1 to i32
    %c0_i32_0 = arith.constant 0 : i32
    %2 = arith.cmpi ne, %1, %c0_i32_0 : i32
    scf.if %2 {
      %cst_10 = arith.constant 0.000000e+00 : f32
      %12 = vector.broadcast %cst_10 : f32 to vector<8x64xf32>
      %c0_11 = arith.constant 0 : index
      %c0_12 = arith.constant 0 : index
      %13 = vector.load %arg7[%c0_11, %c0_12] : memref<8x64xf32, #tpu.memory_space<vmem>>, vector<8x64xf32>
      tpu.vector_store %arg7[%c0_11, %c0_12], %12 {strides = array<i32>} : memref<8x64xf32, #tpu.memory_space<vmem>>, vector<8x64xf32>,
    } else {
    }
    %c0 = arith.constant 0 : index
    %c0_1 = arith.constant 0 : index
    %3 = vector.load %arg7[%c0, %c0_1] : memref<8x64xf32, #tpu.memory_space<vmem>>, vector<8x64xf32>
    %c0_2 = arith.constant 0 : index
    %c0_3 = arith.constant 0 : index
    %4 = vector.load %arg2[%c0_2, %c0_3] : memref<8x16xbf16, #tpu.memory_space<vmem>>, vector<8x16xbf16>
    %c0_4 = arith.constant 0 : index
    %c0_5 = arith.constant 0 : index
    %5 = vector.load %arg3[%c0_4, %c0_5] : memref<16x64xbf16, #tpu.memory_space<vmem>>, vector<16x64xbf16>
    %cst = arith.constant dense<0.000000e+00> : vector<8x64xf32>
    %6 = tpu.matmul %4, %5, %cst {dimension_numbers = #tpu.dot_dimension_numbers<[1], [0], [0], [1], [0, 0, 1, 1], [], []>} : vector<8x16xbf16>, vector<16x64xbf16>, vector<8x64xf32> -> vector<8x64xf32>
    %7 = arith.addf %3, %6 : vector<8x64xf32>
    %c0_6 = arith.constant 0 : index
    %c0_7 = arith.constant 0 : index
    %8 = vector.load %arg7[%c0_6, %c0_7] : memref<8x64xf32, #tpu.memory_space<vmem>>, vector<8x64xf32>
    tpu.vector_store %arg7[%c0_6, %c0_7], %7 {strides = array<i32>} : memref<8x64xf32, #tpu.memory_space<vmem>>, vector<8x64xf32>,
    %c0_i32_8 = arith.constant 0 : i32
    %9 = arith.cmpi eq, %arg1, %c0_i32_8 : i32
    %10 = arith.extui %9 : i1 to i32
    %c0_i32_9 = arith.constant 0 : i32
    %11 = arith.cmpi ne, %10, %c0_i32_9 : i32
    scf.if %11 {
      %c0_10 = arith.constant 0 : index
      %c0_11 = arith.constant 0 : index
      %12 = vector.load %arg7[%c0_10, %c0_11] : memref<8x64xf32, #tpu.memory_space<vmem>>, vector<8x64xf32>
      %c0_12 = arith.constant 0 : index
      %c0_13 = arith.constant 0 : index
      %13 = vector.load %arg4[%c0_12, %c0_13] : memref<1x64xf32, #tpu.memory_space<vmem>>, vector<1x64xf32>
      %14 = vector.broadcast %13 : vector<1x64xf32> to vector<8x64xf32>
      %15 = arith.addf %12, %14 : vector<8x64xf32>
      %cst_14 = arith.constant 0.000000e+00 : f32
      %16 = vector.broadcast %cst_14 : f32 to vector<8x64xf32>
      %17 = arith.maximumf %15, %16 : vector<8x64xf32>
      %18 = arith.truncf %17 : vector<8x64xf32> to vector<8x64xbf16>
      %c0_15 = arith.constant 0 : index
      %c0_16 = arith.constant 0 : index
      %19 = vector.load %arg5[%c0_15, %c0_16] : memref<64x64xbf16, #tpu.memory_space<vmem>>, vector<64x64xbf16>
      %cst_17 = arith.constant dense<0.000000e+00> : vector<8x64xf32>
      %20 = tpu.matmul %18, %19, %cst_17 {dimension_numbers = #tpu.dot_dimension_numbers<[1], [0], [0], [1], [0, 0, 1, 1], [], []>} : vector<8x64xbf16>, vector<64x64xbf16>, vector<8x64xf32> -> vector<8x64xf32>
      %21 = arith.truncf %20 : vector<8x64xf32> to vector<8x64xbf16>
      %c0_18 = arith.constant 0 : index
      %c0_19 = arith.constant 0 : index
      %22 = vector.load %arg6[%c0_18, %c0_19] : memref<8x64xbf16, #tpu.memory_space<vmem>>, vector<8x64xbf16>
      tpu.vector_store %arg6[%c0_18, %c0_19], %21 {strides = array<i32>} : memref<8x64xbf16, #tpu.memory_space<vmem>>, vector<8x64xbf16>,
    } else {
    }
    return
  }
  func.func @transform_0(%arg0: i32, %arg1: i32) -> (i32, i32) {
    %c0_i32 = arith.constant 0 : i32
    return %arg0, %arg1 : i32, i32
  }
  func.func @transform_1(%arg0: i32, %arg1: i32) -> (i32, i32) {
    %c0_i32 = arith.constant 0 : i32
    %c0_i32_0 = arith.constant 0 : i32
    return %arg1, %c0_i32 : i32, i32
  }
  func.func @transform_2(%arg0: i32, %arg1: i32) -> (i32, i32) {
    %c0_i32 = arith.constant 0 : i32
    %c0_i32_0 = arith.constant 0 : i32
    %c0_i32_1 = arith.constant 0 : i32
    return %c0_i32, %c0_i32_0 : i32, i32
  }
  func.func @transform_3(%arg0: i32, %arg1: i32) -> (i32, i32) {
    %c0_i32 = arith.constant 0 : i32
    %c0_i32_0 = arith.constant 0 : i32
    %c0_i32_1 = arith.constant 0 : i32
    return %c0_i32, %c0_i32_0 : i32, i32
  }
  func.func @transform_4(%arg0: i32, %arg1: i32) -> (i32, i32) {
    %c0_i32 = arith.constant 0 : i32
    %c0_i32_0 = arith.constant 0 : i32
    return %arg0, %c0_i32 : i32, i32
  }
}

</mosaic_0001>

<llo_original>
// kernel: tpu_custom_call.1
$region0: #{tpu_custom_call.1}
  #allocation0 [shape = 'u32[]', space=smem, size = 0x4, offset = 0x4, fixed_abs, tag = 'smem constant byte address 0x4 - core index']
  #allocation1 [shape = 'u32[72,128]{1,0:T(1,128)}', space=vmem, size = 0x9000, scoped, tag = 'internal scratch']
  #allocation2 [shape = 'f32[8,64]{1,0:T(8,128)}', space=vmem, size = 0x1000, scoped, tag = 'scratch operand']
  %s0 = inlined_call_operand.hbm [shape: bf16[16,16], index: 0, kind: input, shape index: {}]
  %s1 = inlined_call_operand.hbm [shape: bf16[16,64], index: 1, kind: input, shape index: {}]
  %s2 = inlined_call_operand.vmem [shape: f32[1,64], index: 2, kind: input, shape index: {}]
  %s3 = inlined_call_operand.hbm [shape: bf16[64,64], index: 3, kind: input, shape index: {}]
  %s4 = inlined_call_operand.hbm [shape: bf16[16,64], index: 4, kind: output, shape index: {}]
  %s5 = sld [smem:[#allocation0]]
  $region69: #{tpu_custom_call.1} parent=0
    _
  %s7 = ssub.s32 1, %s5
  %s8 = scalar_select 0, %s7, %s5
  $region1: #{tpu_custom_call.1} parent=0
    #allocation3 [shape = 'u8[4096]{0}', space=vmem, size = 0x1000, scoped, tag = 'input window, operand 0']
    #allocation4 [shape = 's32[2]{0}', space=sflag, size = 0x8, scoped, tag = 'scoped memory for tpu_custom_call.1']
    #allocation5 [shape = 's32[2]{0}', space=sflag, size = 0x8, scoped, tag = 'scoped memory for tpu_custom_call.1']
    #allocation6 [shape = 'u8[4096]{0}', space=vmem, size = 0x1000, scoped, tag = 'input window, operand 1, single buffered']
    #allocation7 [shape = 's32[1]{0}', space=sflag, size = 0x4, scoped, tag = 'scoped memory for tpu_custom_call.1']
    #allocation8 [shape = 'u8[16384]{0}', space=vmem, size = 0x4000, scoped, tag = 'input window, operand 3, single buffered']
    #allocation9 [shape = 'u8[4096]{0}', space=vmem, size = 0x1000, scoped, tag = 'output window, operand 0']
    %9 = vsyncpa [#allocation4], 0
    %s10 = scalar_lea.sflag [#allocation4], 1
    %11 = vsyncpa %s10, 0
    %12 = vsyncpa [#allocation7], 0
    %13 = vsyncpa [#allocation5], 0
    %s14 = scalar_lea.sflag [#allocation5], 1
    %15 = vsyncpa %s14, 0
    loop: start=0, step=1, limit=4
    $region2: #{tpu_custom_call.1} parent=1 // loop_pre_header
      _
    $region3: #{tpu_custom_call.1} parent=1 // loop_header
      %s17 = sphi 0, %s21
      %p18 = scmp.ge.s32.totalorder %s17, 4
      %s24 = sphi 0, %s36
      %s25 = sphi 0, %s32
      %s26 = sphi 0, %s24
      %s27 = sphi 0, %s25
      %s28 = sphi 0, %s26
      %s29 = sphi 0, %s27
      %s41 = sphi 0, %s43
      %s44 = sphi 0, %s41
      %s45 = sphi 0, %s44
      %s61 = sphi 0, %s45
      %s67 = sphi 0, %s69
      %s70 = sphi 0, %s67
      %s71 = sphi 0, %s70
      %s87 = sphi 0, %s71
      %s91 = sphi 0, %s91
      %s93 = sphi 0, %s91
      %s94 = sphi 0, %s93
      %s108 = sphi 0, %s94
      %s112 = sphi 0, %s112
      %s114 = sphi 0, %s112
      %s115 = sphi 0, %s114
      %s129 = sphi 0, %s115
      %s135 = sphi 0, %s137
      %s138 = sphi 0, %s135
      %s139 = sphi 0, %s138
      %s155 = sphi 0, %s139
    $region4: #{tpu_custom_call.1} parent=1 // loop_header_branch
      %20 = sbr.rel (%p18) target = $region8
    $region5: #{tpu_custom_call.1} parent=1 // loop_body
      %s22 = ssub.s32 %s17, 1
      %s23 = ssub.s32 %s17, 2
      %s30 = sadd.s32 1, %s25
      %p31 = scmp.ge.s32.totalorder %s30, 1
      %s32 = scalar_select %p31, 0, %s30
      %s33 = sadd.s32 1, %s24
      %s34 = scalar_select %p31, %s33, %s24
      %p35 = scmp.ge.s32.totalorder %s34, 2
      %s36 = scalar_select %p35, 0, %s34
      %s37 = ssub.s32 %s24, %s36
      %s38 = ssub.s32 %s25, %s32
      %s39 = sor.u32 %s37, %s38
      %p40 = scmp.eq.s32.totalorder %s39, 0
      %s42 = sadd.s32 %s41, 1
      %s43 = scalar_select %p40, %s41, %s42
      %p46 = pneg %p40
      %p47 = scmp.eq.s32.totalorder %s17, 1
      %p48 = por %p46, %p47
      %p49 = scmp.ne.s32.totalorder %s41, %s44
      %p50 = scmp.eq.s32.totalorder %s17, 0
      %p51 = por %p49, %p50
      %p52 = scmp.ne.s32.totalorder %s41, %s44
      %p53 = scmp.eq.s32.totalorder %s22, 1
      %p54 = por %p52, %p53
      %p55 = scmp.ne.s32.totalorder %s44, %s45
      %p56 = scmp.eq.s32.totalorder %s22, 0
      %p57 = por %p55, %p56
      %p58 = scmp.ne.s32.totalorder %s44, %s45
      %p59 = scmp.eq.s32.totalorder %s23, 1
      %p60 = por %p58, %p59
      %p62 = scmp.ne.s32.totalorder %s45, %s61
      %p63 = scmp.eq.s32.totalorder %s23, 0
      %p64 = por %p62, %p63
      %s65 = ssub.s32 %s25, %s32
      %p66 = scmp.eq.s32.totalorder %s65, 0
      %s68 = sadd.s32 %s67, 1
      %s69 = scalar_select %p66, %s67, %s68
      %p72 = pneg %p66
      %p73 = scmp.eq.s32.totalorder %s17, 1
      %p74 = por %p72, %p73
      %p75 = scmp.ne.s32.totalorder %s67, %s70
      %p76 = scmp.eq.s32.totalorder %s17, 0
      %p77 = por %p75, %p76
      %p78 = scmp.ne.s32.totalorder %s67, %s70
      %p79 = scmp.eq.s32.totalorder %s22, 1
      %p80 = por %p78, %p79
      %p81 = scmp.ne.s32.totalorder %s70, %s71
      %p82 = scmp.eq.s32.totalorder %s22, 0
      %p83 = por %p81, %p82
      %p84 = scmp.ne.s32.totalorder %s70, %s71
      %p85 = scmp.eq.s32.totalorder %s23, 1
      %p86 = por %p84, %p85
      %p88 = scmp.ne.s32.totalorder %s71, %s87
      %p89 = scmp.eq.s32.totalorder %s23, 0
      %p90 = por %p88, %p89
      %s92 = sadd.s32 %s91, 1
      %p95 = scmp.eq.s32.totalorder %s17, 1
      %p96 = scmp.ne.s32.totalorder %s91, %s93
      %p97 = scmp.eq.s32.totalorder %s17, 0
      %p98 = por %p96, %p97
      %p99 = scmp.ne.s32.totalorder %s91, %s93
      %p100 = scmp.eq.s32.totalorder %s22, 1
      %p101 = por %p99, %p100
      %p102 = scmp.ne.s32.totalorder %s93, %s94
      %p103 = scmp.eq.s32.totalorder %s22, 0
      %p104 = por %p102, %p103
      %p105 = scmp.ne.s32.totalorder %s93, %s94
      %p106 = scmp.eq.s32.totalorder %s23, 1
      %p107 = por %p105, %p106
      %p109 = scmp.ne.s32.totalorder %s94, %s108
      %p110 = scmp.eq.s32.totalorder %s23, 0
      %p111 = por %p109, %p110
      %s113 = sadd.s32 %s112, 1
      %p116 = scmp.eq.s32.totalorder %s17, 1
      %p117 = scmp.ne.s32.totalorder %s112, %s114
      %p118 = scmp.eq.s32.totalorder %s17, 0
      %p119 = por %p117, %p118
      %p120 = scmp.ne.s32.totalorder %s112, %s114
      %p121 = scmp.eq.s32.totalorder %s22, 1
      %p122 = por %p120, %p121
      %p123 = scmp.ne.s32.totalorder %s114, %s115
      %p124 = scmp.eq.s32.totalorder %s22, 0
      %p125 = por %p123, %p124
      %p126 = scmp.ne.s32.totalorder %s114, %s115
      %p127 = scmp.eq.s32.totalorder %s23, 1
      %p128 = por %p126, %p127
      %p130 = scmp.ne.s32.totalorder %s115, %s129
      %p131 = scmp.eq.s32.totalorder %s23, 0
      %p132 = por %p130, %p131
      %s133 = ssub.s32 %s24, %s36
      %p134 = scmp.eq.s32.totalorder %s133, 0
      %s136 = sadd.s32 %s135, 1
      %s137 = scalar_select %p134, %s135, %s136
      %p140 = pneg %p134
      %p141 = scmp.eq.s32.totalorder %s17, 1
      %p142 = por %p140, %p141
      %p143 = scmp.ne.s32.totalorder %s135, %s138
      %p144 = scmp.eq.s32.totalorder %s17, 0
      %p145 = por %p143, %p144
      %p146 = scmp.ne.s32.totalorder %s135, %s138
      %p147 = scmp.eq.s32.totalorder %s22, 1
      %p148 = por %p146, %p147
      %p149 = scmp.ne.s32.totalorder %s138, %s139
      %p150 = scmp.eq.s32.totalorder %s22, 0
      %p151 = por %p149, %p150
      %p152 = scmp.ne.s32.totalorder %s138, %s139
      %p153 = scmp.eq.s32.totalorder %s23, 1
      %p154 = por %p152, %p153
      %p156 = scmp.ne.s32.totalorder %s139, %s155
      %p157 = scmp.eq.s32.totalorder %s23, 0
      %p158 = por %p156, %p157
      %p159 = scmp.le.s32.totalorder 1, %s17
      %p160 = scmp.lt.s32.totalorder %s17, 3
      %p161 = pnand %p159, %p160
      %p162 = pneg %p161
      // Predicated region
      $region9: #{tpu_custom_call.1} parent=5 // pred_check
        _
      $region10: #{tpu_custom_call.1} parent=5 // pred_check_branch
        %164 = sbr.rel (%p161) target = $region12
      $region11: #{tpu_custom_call.1} parent=5 // pred_region
        %s165 = ssub.s32 %s17, 1
        // Predicated region
        $region13: #{tpu_custom_call.1} parent=11 // pred_check
          %p166 = pneg %p83
        $region14: #{tpu_custom_call.1} parent=11 // pred_check_branch
          %168 = sbr.rel (%p166) target = $region16
        $region15: #{tpu_custom_call.1} parent=11 // pred_region
          %s169 = smul.u32 2, %s27
          %171 = vsyncadd [#allocation7], 0
          %s172 = smul.addr %s169, 4
          %s173 = scalar_lea.hbm %s1, %s172
          %s174 = sshll.u32 %s173, 4
          %s175 = int_to_ptr.hbm [resolvable:$true] %s174
          %s176 = sshll.u32 [#allocation6], 4
          %s177 = int_to_ptr.vmem [resolvable:$true] %s176
          %182 = dma.hbm_to_vmem [thread:$0]  %s175, 128, %s177, [#allocation7], 64, 64, 4
        $region16: #{tpu_custom_call.1} parent=11 // pred_fallthru
          _
        // Predicated region
        $region17: #{tpu_custom_call.1} parent=11 // pred_check
          %p183 = pneg %p104
        $region18: #{tpu_custom_call.1} parent=11 // pred_check_branch
          %185 = sbr.rel (%p183) target = $region20
        $region19: #{tpu_custom_call.1} parent=11 // pred_region
          _
        $region20: #{tpu_custom_call.1} parent=11 // pred_fallthru
          _
        // Predicated region
        $region21: #{tpu_custom_call.1} parent=11 // pred_check
          %p186 = pneg %p125
        $region22: #{tpu_custom_call.1} parent=11 // pred_check_branch
          %188 = sbr.rel (%p186) target = $region24
        $region23: #{tpu_custom_call.1} parent=11 // pred_region
          %190 = vsyncadd [#allocation7], 0
          %s191 = sshll.u32 %s3, 4
          %s192 = int_to_ptr.hbm [resolvable:$true] %s191
          %s193 = sshll.u32 [#allocation8], 4
          %s194 = int_to_ptr.vmem [resolvable:$true] %s193
          %199 = dma.hbm_to_vmem [thread:$0]  %s192, 512, %s194, [#allocation7], 64, 64, 4
        $region24: #{tpu_custom_call.1} parent=11 // pred_fallthru
          _
      $region12: #{tpu_custom_call.1} parent=5 // pred_fallthru
        _
      %p200 = scmp.lt.s32.totalorder %s17, 2
      // Predicated region
      $region25: #{tpu_custom_call.1} parent=5 // pred_check
        %p201 = pneg %p200
      $region26: #{tpu_custom_call.1} parent=5 // pred_check_branch
        %203 = sbr.rel (%p201) target = $region28
      $region27: #{tpu_custom_call.1} parent=5 // pred_region
        // Predicated region
        $region29: #{tpu_custom_call.1} parent=27 // pred_check
          %p204 = pneg %p51
        $region30: #{tpu_custom_call.1} parent=27 // pred_check_branch
          %206 = sbr.rel (%p204) target = $region32
        $region31: #{tpu_custom_call.1} parent=27 // pred_region
          %s207 = sand.u32 %s41, 1
          %s208 = scalar_lea.sflag [#allocation4], %s207
          %s209 = sand.u32 %s41, 1
          %s210 = smul.addr %s209, 4
          %s211 = scalar_lea.vmem [#allocation3], %s210
          %213 = vsyncadd %s208, 0
          %s214 = sadd.s32 %s25, %s24
          %s215 = smul.addr %s214, 4
          %s216 = scalar_lea.hbm %s0, %s215
          %s218 = sshll.u32 %s216, 4
          %s219 = int_to_ptr.hbm [resolvable:$true] %s218
          %s220 = sshll.u32 %s211, 4
          %s221 = int_to_ptr.vmem [resolvable:$true] %s220
          %223 = dma.hbm_to_vmem [thread:$0]  %s219, 64, %s221, %s208
        $region32: #{tpu_custom_call.1} parent=27 // pred_fallthru
          _
      $region28: #{tpu_custom_call.1} parent=5 // pred_fallthru
        _
      %p224 = scmp.le.s32.totalorder 1, %s17
      %p225 = scmp.lt.s32.totalorder %s17, 3
      %p226 = pnand %p224, %p225
      %p227 = pneg %p226
      // Predicated region
      $region33: #{tpu_custom_call.1} parent=5 // pred_check
        _
      $region34: #{tpu_custom_call.1} parent=5 // pred_check_branch
        %229 = sbr.rel (%p226) target = $region36
      $region35: #{tpu_custom_call.1} parent=5 // pred_region
        %s230 = ssub.s32 %s17, 1
        %s231 = sand.u32 %s44, 1
        %s232 = scalar_lea.sflag [#allocation4], %s231
        %s233 = sand.u32 %s44, 1
        %s234 = smul.addr %s233, 4
        %s235 = scalar_lea.vmem [#allocation3], %s234
        // Predicated region
        $region37: #{tpu_custom_call.1} parent=35 // pred_check
          %p236 = pneg %p57
        $region38: #{tpu_custom_call.1} parent=35 // pred_check_branch
          %238 = sbr.rel (%p236) target = $region40
        $region39: #{tpu_custom_call.1} parent=35 // pred_region
          %240 = dma.done %s232, 64
        $region40: #{tpu_custom_call.1} parent=35 // pred_fallthru
          _
        // Predicated region
        $region41: #{tpu_custom_call.1} parent=35 // pred_check
          %p241 = pneg %p83
        $region42: #{tpu_custom_call.1} parent=35 // pred_check_branch
          %243 = sbr.rel (%p241) target = $region44
        $region43: #{tpu_custom_call.1} parent=35 // pred_region
          %245 = dma.done [#allocation7], 128
        $region44: #{tpu_custom_call.1} parent=35 // pred_fallthru
          _
        // Predicated region
        $region45: #{tpu_custom_call.1} parent=35 // pred_check
          %p246 = pneg %p125
        $region46: #{tpu_custom_call.1} parent=35 // pred_check_branch
          %248 = sbr.rel (%p246) target = $region48
        $region47: #{tpu_custom_call.1} parent=35 // pred_region
          %250 = dma.done [#allocation7], 512
        $region48: #{tpu_custom_call.1} parent=35 // pred_fallthru
          _
        %s251 = sand.u32 %s44, 1
        %s252 = scalar_lea.sflag [#allocation4], %s251
        %s253 = sand.u32 %s44, 1
        %s254 = smul.addr %s253, 4
        %s255 = scalar_lea.vmem [#allocation3], %s254
        %p256 = pneg %p57
        %p257 = pneg %p54
        %p258 = pneg %p83
        %p259 = pneg %p80
        %p260 = pneg %p104
        %p261 = pneg %p101
        %p262 = pneg %p125
        %p263 = pneg %p122
        %p264 = pneg %p151
        %p265 = pneg %p148
        %s266 = sand.u32 %s138, 1
        %s267 = scalar_lea.sflag [#allocation5], %s266
        %s268 = sand.u32 %s138, 1
        %s269 = smul.addr %s268, 4
        %s270 = scalar_lea.vmem [#allocation9], %s269
        %s271 = smul.u32 2, %s27
        %p273 = scmp.eq.s32.totalorder %s27, 0
        // Predicated region
        $region49: #{tpu_custom_call.1} parent=35 // pred_check
          %p274 = pneg %p273
        $region50: #{tpu_custom_call.1} parent=35 // pred_check_branch
          %276 = sbr.rel (%p274) target = $region52
        $region51: #{tpu_custom_call.1} parent=35 // pred_region
          %vm277 = vcmask 523264
          %278 = vst.msk [vmem:[#allocation2] sm:$0xff] %vm277, 0.0
        $region52: #{tpu_custom_call.1} parent=35 // pred_fallthru
          _
        %v279 = vld [vmem:[#allocation2] sm:$0xff]
        %v280 = vld [vmem:[%s235] sm:$0xf]
        %v281 = vld [vmem:[#allocation6] sm:$0xf]
        %v282 = vld [vmem:[#allocation6 + $0x4] sm:$0xf]
        %v285 = vunpack.c.l.b16 %v281
        %v286 = vunpack.c.l.b16 %v282
        %v287 = vpack.c.b16 %v286, %v285
        %vm289 = vcmask 130048
        %v291 = vsel %vm289, %v280, 0
        %293 = vmatpush.bf16.msra.mxu0 0
        %294 = vmatpush.bf16.msra.mxu0 0
        %295 = vmatpush.bf16.msra.mxu0 0
        %296 = vmatpush.bf16.msra.mxu0 0
        %297 = vmatpush.bf16.msra.mxu0 0
        %298 = vmatpush.bf16.msra.mxu0 0
        %299 = vmatpush.bf16.msra.mxu0 0
        %300 = vmatpush.bf16.msra.mxu0 %v287
        %301 = vmatmul.bf16.gmra.mxu0 %v291
        %v302 = vpop.f32.mrf.mxu0
        %v303 = vadd.f32 0.0, %v302
        %v304 = vpop.f32.mrf.mxu0
        %305 = vdwg.mxu0
        %v306 = vadd.f32 %v279, %v303
        %vm307 = vcmask 523264
        %308 = vst.msk [vmem:[#allocation2] sm:$0xff] %vm307, %v306
        // Predicated region
        $region53: #{tpu_custom_call.1} parent=35 // pred_check
          %p309 = pneg %p273
        $region54: #{tpu_custom_call.1} parent=35 // pred_check_branch
          %311 = sbr.rel (%p309) target = $region56
        $region55: #{tpu_custom_call.1} parent=35 // pred_region
          %v312 = vld [vmem:[#allocation2] sm:$0xff]
          %v313 = vld [vmem:[%s2] sm:$0x1]
          %v315 = vperm.slane %v313, 0
          %v317 = vadd.f32 %v312, %v315
          %v318 = vmax.f32 %v317, 0.0
          %v319 = vpack.c.bf16 %v318, %v318
          %v320 = vld [vmem:[#allocation8] sm:$0xf]
          %v321 = vld [vmem:[#allocation8 + $0x4] sm:$0xf]
          %v322 = vld [vmem:[#allocation8 + $0x8] sm:$0xf]
          %v323 = vld [vmem:[#allocation8 + $0xc] sm:$0xf]
          %v324 = vld [vmem:[#allocation8 + $0x10] sm:$0xf]
          %v325 = vld [vmem:[#allocation8 + $0x14] sm:$0xf]
          %v326 = vld [vmem:[#allocation8 + $0x18] sm:$0xf]
          %v327 = vld [vmem:[#allocation8 + $0x1c] sm:$0xf]
          %v336 = vunpack.c.l.b16 %v320
          %v337 = vunpack.c.l.b16 %v321
          %v338 = vunpack.c.l.b16 %v322
          %v339 = vunpack.c.l.b16 %v323
          %v340 = vunpack.c.l.b16 %v324
          %v341 = vunpack.c.l.b16 %v325
          %v342 = vunpack.c.l.b16 %v326
          %v343 = vunpack.c.l.b16 %v327
          %v344 = vpack.c.b16 %v337, %v336
          %v345 = vpack.c.b16 %v339, %v338
          %v346 = vpack.c.b16 %v341, %v340
          %v347 = vpack.c.b16 %v343, %v342
          %v353 = vsel %vm307, %v319, 0
          %355 = vmatpush.bf16.msra.mxu0 0
          %356 = vmatpush.bf16.msra.mxu0 0
          %357 = vmatpush.bf16.msra.mxu0 0
          %358 = vmatpush.bf16.msra.mxu0 0
          %359 = vmatpush.bf16.msra.mxu0 %v347
          %360 = vmatpush.bf16.msra.mxu0 %v346
          %361 = vmatpush.bf16.msra.mxu0 %v345
          %362 = vmatpush.bf16.msra.mxu0 %v344
          %363 = vmatmul.bf16.gmra.mxu0 %v353
          %v364 = vpop.f32.mrf.mxu0
          %v365 = vadd.f32 0.0, %v364
          %v366 = vpop.f32.mrf.mxu0
          %367 = vdwg.mxu0
          %v368 = vpack.c.bf16 %v365, %v365
          %vm369 = vcmask 519168
          %370 = vst.msk [vmem:[%s270] sm:$0xf] %vm369, %v368
        $region56: #{tpu_custom_call.1} parent=35 // pred_fallthru
          _
        %s371 = sand.u32 %s138, 1
        %s372 = scalar_lea.sflag [#allocation5], %s371
        %s373 = sand.u32 %s138, 1
        %s374 = smul.addr %s373, 4
        %s375 = scalar_lea.vmem [#allocation9], %s374
        // Predicated region
        $region57: #{tpu_custom_call.1} parent=35 // pred_check
          %p376 = pneg %p148
        $region58: #{tpu_custom_call.1} parent=35 // pred_check_branch
          %378 = sbr.rel (%p376) target = $region60
        $region59: #{tpu_custom_call.1} parent=35 // pred_region
          %380 = vsyncadd %s372, 0
          %s381 = smul.addr %s26, 4
          %s382 = scalar_lea.hbm %s4, %s381
          %s384 = sshll.u32 %s375, 4
          %s385 = int_to_ptr.vmem [resolvable:$true] %s384
          %s386 = sshll.u32 %s382, 4
          %s387 = int_to_ptr.hbm [resolvable:$true] %s386
          %389 = dma.vmem_to_hbm [thread:$0]  %s385, 64, %s387, %s372
        $region60: #{tpu_custom_call.1} parent=35 // pred_fallthru
          _
      $region36: #{tpu_custom_call.1} parent=5 // pred_fallthru
        _
      %p390 = scmp.le.s32.totalorder 2, %s17
      // Predicated region
      $region61: #{tpu_custom_call.1} parent=5 // pred_check
        %p391 = pneg %p390
      $region62: #{tpu_custom_call.1} parent=5 // pred_check_branch
        %393 = sbr.rel (%p391) target = $region64
      $region63: #{tpu_custom_call.1} parent=5 // pred_region
        %s394 = ssub.s32 %s17, 2
        // Predicated region
        $region65: #{tpu_custom_call.1} parent=63 // pred_check
          %p395 = pneg %p154
        $region66: #{tpu_custom_call.1} parent=63 // pred_check_branch
          %397 = sbr.rel (%p395) target = $region68
        $region67: #{tpu_custom_call.1} parent=63 // pred_region
          %s398 = sand.u32 %s139, 1
          %s399 = scalar_lea.sflag [#allocation5], %s398
          %s400 = sand.u32 %s139, 1
          %s401 = smul.addr %s400, 4
          %s402 = scalar_lea.vmem [#allocation9], %s401
          %404 = dma.done %s399, 64
        $region68: #{tpu_custom_call.1} parent=63 // pred_fallthru
          _
      $region64: #{tpu_custom_call.1} parent=5 // pred_fallthru
        _
    $region6: #{tpu_custom_call.1} parent=1 // loop_footer
      %s21 = sadd.s32 1, %s17
    $region7: #{tpu_custom_call.1} parent=1 // loop_footer_branch
      %16 = sbr.rel target = $region3
    $region8: #{tpu_custom_call.1} parent=1 // loop_exit
      _
    %405 = vsyncpa [#allocation4], 1
    %s406 = scalar_lea.sflag [#allocation4], 1
    %407 = vsyncpa %s406, 1
    %408 = vsyncpa [#allocation7], 1
    %409 = vsyncpa [#allocation5], 1
    %s410 = scalar_lea.sflag [#allocation5], 1
    %411 = vsyncpa %s410, 1

</llo_original>
